<compile_context>
chip_gen: v5e
topology: v5e:2x2
jax: 0.10.0
libtpu: 0.0.40
codegen_flags: <defaults>
</compile_context>

<pallas_src>
import math
import jax
import jax.numpy as jnp
from jax.experimental import pallas as pl
from jax.experimental.pallas import tpu as pltpu


# ----------------------------------------------------------------------------
# Kernel: fused qkv + LoRA(q) + LoRA(v)
# ----------------------------------------------------------------------------
def lora_qkv_kernel(x_ref, wcat_ref, bias_ref, bqv_ref, o_ref):
    # x_ref    : (TN, D)       input dtype   token tile
    # wcat_ref : (D, 3D + 2r)  bf16          [W_qkv | A_q | A_v]   (resident, 1-buffered)
    # bias_ref : (1, 3D)       f32           qkv bias              (resident, 1-buffered)
    # bqv_ref  : (2r, 2D)      bf16          [[B_q, 0], [0, B_v]]  (resident, 1-buffered)
    # o_ref    : (TN, 3D)      bf16 (default)
    d3 = bias_ref.shape[-1]
    d = d3 // 3

    # Cast to the MXU dtype in-kernel (saves a full HBM pass in the wrapper).
    x = x_ref[...].astype(wcat_ref.dtype)

    # One MXU pass produces both the qkv pre-activation and the two rank-r
    # LoRA intermediates (A_q, A_v are folded into the weight slab).
    h = jnp.dot(x, wcat_ref[...], preferred_element_type=jnp.float32)    # (TN, 3D+2r) f32

    # Rank-2r matmul expands to dim and routes q/v contributions through the
    # block-diagonal B (bf16 re-cast for the MXU; covered by tolerance).
    lora = jnp.dot(h[:, d3:].astype(bqv_ref.dtype), bqv_ref[...],
                   preferred_element_type=jnp.float32)                   # (TN, 2D) f32

    b = bias_ref[...]
    # Three slab stores; at real D (multiple of 128) each is lane-aligned, and
    # the HBM writeback is still one lane-dense (TN, 3D) tile.
    o_ref[:, :d]    = (h[:, :d]     + b[:, :d]     + lora[:, :d]).astype(o_ref.dtype)
    o_ref[:, d:2*d] = (h[:, d:2*d]  + b[:, d:2*d]               ).astype(o_ref.dtype)
    o_ref[:, 2*d:]  = (h[:, 2*d:d3] + b[:, 2*d:]   + lora[:, d:]).astype(o_ref.dtype)


# ----------------------------------------------------------------------------
# One-time weight preparation (hoisted out of the per-call path)
# ----------------------------------------------------------------------------
def prepare_lora_qkv_params(w_qkv, b_qkv, a_q, b_q, a_v, b_v,
                            *, weight_dtype=jnp.bfloat16):
    """Fuse the frozen qkv weights with the LoRA-A projections and build the
    block-diagonal LoRA-B. Call once when weights are bound; reuse per forward."""
    d = w_qkv.shape[0]
    r = a_q.shape[1]
    # [W_qkv | A_q | A_v]  (D, 3D + 2r): both LoRA-A projections ride the main MXU pass.
    w_cat = jnp.concatenate([w_qkv, a_q, a_v], axis=1).astype(weight_dtype)
    # Block-diagonal LoRA-B covering only the q / v column ranges (no zero k block):
    # [[B_q, 0], [0, B_v]]  (2r, 2D).
    zr = jnp.zeros((r, d), b_q.dtype)
    b_qv = jnp.concatenate(
        [jnp.concatenate([b_q, zr], axis=1),
         jnp.concatenate([zr, b_v], axis=1)], axis=0).astype(weight_dtype)
    bias = b_qkv.reshape(1, 3 * d).astype(jnp.float32)
    # TODO(synk): optional further step — fold dW = A @ B into W (in f32, then cast)
    # and drop the second matmul entirely; skipped to preserve (x@A)@B numerics.
    return {"w_cat": w_cat, "bias": bias, "b_qv": b_qv}


# ----------------------------------------------------------------------------
# Forward wrapper
# ----------------------------------------------------------------------------
def lora_qkv(x, params, *, tn=512, out_dtype=jnp.bfloat16):
    """x: (B, N, D) -> (B, N, 3D) with LoRA deltas added to the q and v columns."""
    B, N, D = x.shape
    d3 = 3 * D
    w_cat, bias, b_qv = params["w_cat"], params["bias"], params["b_qv"]
    r2 = w_cat.shape[1] - d3                       # 2 * rank

    n_tok = B * N
    # Keep the parallel grid at >= 2 token tiles for short sequences (v7x has
    # two TensorCores sharded over "parallel" axes); keep tn a sublane multiple.
    if n_tok < 2 * tn:
        tn = max(8, ((pl.cdiv(n_tok, 2) + 7) // 8) * 8)
    grid = (pl.cdiv(n_tok, tn),)                   # ragged last tile is fine (rows independent)

    x_flat = x.reshape(n_tok, D)                   # no pad, no cast: zero extra HBM passes

    # Actual VMEM footprint (+headroom for Mosaic scratch) instead of a blanket
    # limit — matters on v7x's 64 MiB/TC.
    xb = jnp.dtype(x.dtype).itemsize
    ob = jnp.dtype(out_dtype).itemsize
    weights = (w_cat.size * w_cat.dtype.itemsize + bias.size * bias.dtype.itemsize
               + b_qv.size * b_qv.dtype.itemsize)                     # single-buffered
    tiles = 2 * tn * D * xb + 2 * tn * d3 * ob                        # double-buffered x / out
    temps = tn * (d3 + r2) * 4 + tn * 2 * D * 4 + tn * D * 2          # f32 h, f32 lora, bf16 x
    vmem_bytes = int(1.4 * (weights + tiles + temps)) + (4 << 20)
    vmem_bytes = max(16 << 20, min(vmem_bytes, 100 << 20))

    out = pl.pallas_call(
        lora_qkv_kernel,
        out_shape=jax.ShapeDtypeStruct((n_tok, d3), out_dtype),
        grid=grid,
        in_specs=[
            pl.BlockSpec((tn, D), lambda i: (i, 0)),                   # token tile
            pl.BlockSpec(w_cat.shape, lambda i: (0, 0),
                         pipeline_mode=pl.Buffered(1)),                # resident fused weights
            pl.BlockSpec(bias.shape, lambda i: (0, 0),
                         pipeline_mode=pl.Buffered(1)),                # resident bias
            pl.BlockSpec(b_qv.shape, lambda i: (0, 0),
                         pipeline_mode=pl.Buffered(1)),                # resident LoRA-B
        ],
        out_specs=pl.BlockSpec((tn, d3), lambda i: (i, 0)),
        compiler_params=pltpu.CompilerParams(
            dimension_semantics=("parallel",),                         # token tiles independent
            vmem_limit_bytes=vmem_bytes),
    )(x_flat, w_cat, bias, b_qv)

    return out.reshape(B, N, d3)


# ----------------------------------------------------------------------------
# Pure-JAX reference (mirrors the PyTorch forward exactly, f32)
# ----------------------------------------------------------------------------
def lora_qkv_ref(x, w_qkv, b_qkv, a_q, b_q, a_v, b_v):
    d = x.shape[-1]
    qkv = x @ w_qkv + b_qkv
    new_q = (x @ a_q) @ b_q
    new_v = (x @ a_v) @ b_v
    qkv = qkv.at[..., :d].add(new_q)
    qkv = qkv.at[..., -d:].add(new_v)
    return qkv


# ----------------------------------------------------------------------------
# Parameter construction (mirrors nn.Linear default init / LoRA init)
# ----------------------------------------------------------------------------
def _uniform(key, shape, bound):
    return jax.random.uniform(key, shape, jnp.float32, -bound, bound)


def make_params(key, dim, r):
    ks = jax.random.split(key, 6)
    bound = 1.0 / math.sqrt(dim)
    return {
        # frozen qkv Linear(dim, 3*dim, bias=True), default PyTorch init
        "w_qkv": _uniform(ks[0], (dim, 3 * dim), bound),
        "b_qkv": _uniform(ks[1], (3 * dim,), bound),
        # LoRA A: kaiming_uniform(a=sqrt(5)) -> uniform(+-1/sqrt(fan_in))
        "a_q": _uniform(ks[2], (dim, r), bound),
        "a_v": _uniform(ks[3], (dim, r), bound),
        # LoRA B: standard init is zeros; use small non-zero values here so the
        # LoRA path is actually exercised by the numerical check.
        "b_q": _uniform(ks[4], (r, dim), 0.1),
        "b_v": _uniform(ks[5], (r, dim), 0.1),
    }


if __name__ == "__main__":
    # Small shapes consistent with the module: x is (B, N, C) token sequence.
    B, N, dim, r = 2, 128, 32, 4

    key = jax.random.PRNGKey(0)
    k_x, k_p = jax.random.split(key)
    x = jax.random.normal(k_x, (B, N, dim), jnp.float32)
    p = make_params(k_p, dim, r)

    # Hoisted weight fusion: prepared once, reused for every forward call.
    prepared = prepare_lora_qkv_params(p["w_qkv"], p["b_qkv"], p["a_q"], p["b_q"],
                                       p["a_v"], p["b_v"])
    prepared = jax.block_until_ready(prepared)

    # Default tn=512 auto-shrinks to 128 here -> 2 parallel token tiles.
    out = lora_qkv(x, prepared)
    out = jax.block_until_ready(out)

    ref = lora_qkv_ref(x, p["w_qkv"], p["b_qkv"], p["a_q"], p["b_q"],
                       p["a_v"], p["b_v"])

    assert out.shape == (B, N, 3 * dim)
    assert out.dtype == jnp.bfloat16
    out_f32 = out.astype(jnp.float32)
    assert bool(jnp.all(jnp.isfinite(out_f32)))
    # bf16 MXU inputs + bf16 output with f32 accumulation -> loose-ish tolerance.
    assert bool(jnp.allclose(out_f32, ref, atol=5e-2, rtol=5e-2)), \
        float(jnp.max(jnp.abs(out_f32 - ref)))
    print("KERNEL_OK")
</pallas_src>

<mosaic_0001>
module attributes {stable_mosaic.version = 11 : i64} {
  func.func @lora_qkv_kernel(%arg0: i32, %arg1: memref<128x32xf32, #tpu.memory_space<vmem>>, %arg2: memref<32x104xbf16, #tpu.memory_space<vmem>>, %arg3: memref<1x96xf32, #tpu.memory_space<vmem>>, %arg4: memref<8x64xbf16, #tpu.memory_space<vmem>>, %arg5: memref<128x96xbf16, #tpu.memory_space<vmem>>) attributes {dimension_semantics = [#tpu.dimension_semantics<parallel>], iteration_bounds = array<i64: 2>, scalar_prefetch = 0 : i64, scratch_operands = 0 : i64, tpu.core_type = #tpu.core_type<tc>, window_params = [{transform_indices = @transform_0, window_bounds = array<i64: 128, 32>}, {pipeline_mode = #tpu.pipeline_mode<synchronous>, transform_indices = @transform_1, window_bounds = array<i64: 32, 104>}, {pipeline_mode = #tpu.pipeline_mode<synchronous>, transform_indices = @transform_2, window_bounds = array<i64: 1, 96>}, {pipeline_mode = #tpu.pipeline_mode<synchronous>, transform_indices = @transform_3, window_bounds = array<i64: 8, 64>}, {transform_indices = @transform_4, window_bounds = array<i64: 128, 96>}]} {
    %c0 = arith.constant 0 : index
    %c0_0 = arith.constant 0 : index
    %0 = vector.load %arg1[%c0, %c0_0] : memref<128x32xf32, #tpu.memory_space<vmem>>, vector<128x32xf32>
    %1 = arith.truncf %0 : vector<128x32xf32> to vector<128x32xbf16>
    %c0_1 = arith.constant 0 : index
    %c0_2 = arith.constant 0 : index
    %2 = vector.load %arg2[%c0_1, %c0_2] : memref<32x104xbf16, #tpu.memory_space<vmem>>, vector<32x104xbf16>
    %cst = arith.constant dense<0.000000e+00> : vector<128x104xf32>
    %3 = tpu.matmul %1, %2, %cst {dimension_numbers = #tpu.dot_dimension_numbers<[1], [0], [0], [1], [0, 0, 1, 1], [], []>} : vector<128x32xbf16>, vector<32x104xbf16>, vector<128x104xf32> -> vector<128x104xf32>
    %4 = vector.extract_strided_slice %3 {offsets = [0, 96], sizes = [128, 8], strides = [1, 1]} : vector<128x104xf32> to vector<128x8xf32>
    %5 = arith.truncf %4 : vector<128x8xf32> to vector<128x8xbf16>
    %c0_3 = arith.constant 0 : index
    %c0_4 = arith.constant 0 : index
    %6 = vector.load %arg4[%c0_3, %c0_4] : memref<8x64xbf16, #tpu.memory_space<vmem>>, vector<8x64xbf16>
    %cst_5 = arith.constant dense<0.000000e+00> : vector<128x64xf32>
    %7 = tpu.matmul %5, %6, %cst_5 {dimension_numbers = #tpu.dot_dimension_numbers<[1], [0], [0], [1], [0, 0, 1, 1], [], []>} : vector<128x8xbf16>, vector<8x64xbf16>, vector<128x64xf32> -> vector<128x64xf32>
    %c0_6 = arith.constant 0 : index
    %c0_7 = arith.constant 0 : index
    %8 = vector.load %arg3[%c0_6, %c0_7] : memref<1x96xf32, #tpu.memory_space<vmem>>, vector<1x96xf32>
    %9 = vector.extract_strided_slice %3 {offsets = [0, 0], sizes = [128, 32], strides = [1, 1]} : vector<128x104xf32> to vector<128x32xf32>
    %10 = vector.extract_strided_slice %8 {offsets = [0, 0], sizes = [1, 32], strides = [1, 1]} : vector<1x96xf32> to vector<1x32xf32>
    %11 = vector.broadcast %10 : vector<1x32xf32> to vector<128x32xf32>
    %12 = arith.addf %9, %11 : vector<128x32xf32>
    %13 = vector.extract_strided_slice %7 {offsets = [0, 0], sizes = [128, 32], strides = [1, 1]} : vector<128x64xf32> to vector<128x32xf32>
    %14 = arith.addf %12, %13 : vector<128x32xf32>
    %15 = arith.truncf %14 : vector<128x32xf32> to vector<128x32xbf16>
    %c0_8 = arith.constant 0 : index
    %c0_9 = arith.constant 0 : index
    %16 = vector.load %arg5[%c0_8, %c0_9] : memref<128x96xbf16, #tpu.memory_space<vmem>>, vector<128x32xbf16>
    tpu.vector_store %arg5[%c0_8, %c0_9], %15 {strides = array<i32>} : memref<128x96xbf16, #tpu.memory_space<vmem>>, vector<128x32xbf16>,
    %17 = vector.extract_strided_slice %3 {offsets = [0, 32], sizes = [128, 32], strides = [1, 1]} : vector<128x104xf32> to vector<128x32xf32>
    %18 = vector.extract_strided_slice %8 {offsets = [0, 32], sizes = [1, 32], strides = [1, 1]} : vector<1x96xf32> to vector<1x32xf32>
    %19 = vector.broadcast %18 : vector<1x32xf32> to vector<128x32xf32>
    %20 = arith.addf %17, %19 : vector<128x32xf32>
    %21 = arith.truncf %20 : vector<128x32xf32> to vector<128x32xbf16>
    %c0_10 = arith.constant 0 : index
    %c32 = arith.constant 32 : index
    %22 = vector.load %arg5[%c0_10, %c32] : memref<128x96xbf16, #tpu.memory_space<vmem>>, vector<128x32xbf16>
    tpu.vector_store %arg5[%c0_10, %c32], %21 {strides = array<i32>} : memref<128x96xbf16, #tpu.memory_space<vmem>>, vector<128x32xbf16>,
    %23 = vector.extract_strided_slice %3 {offsets = [0, 64], sizes = [128, 32], strides = [1, 1]} : vector<128x104xf32> to vector<128x32xf32>
    %24 = vector.extract_strided_slice %8 {offsets = [0, 64], sizes = [1, 32], strides = [1, 1]} : vector<1x96xf32> to vector<1x32xf32>
    %25 = vector.broadcast %24 : vector<1x32xf32> to vector<128x32xf32>
    %26 = arith.addf %23, %25 : vector<128x32xf32>
    %27 = vector.extract_strided_slice %7 {offsets = [0, 32], sizes = [128, 32], strides = [1, 1]} : vector<128x64xf32> to vector<128x32xf32>
    %28 = arith.addf %26, %27 : vector<128x32xf32>
    %29 = arith.truncf %28 : vector<128x32xf32> to vector<128x32xbf16>
    %c0_11 = arith.constant 0 : index
    %c64 = arith.constant 64 : index
    %30 = vector.load %arg5[%c0_11, %c64] : memref<128x96xbf16, #tpu.memory_space<vmem>>, vector<128x32xbf16>
    tpu.vector_store %arg5[%c0_11, %c64], %29 {strides = array<i32>} : memref<128x96xbf16, #tpu.memory_space<vmem>>, vector<128x32xbf16>,
    return
  }
  func.func @transform_0(%arg0: i32) -> (i32, i32) {
    %c0_i32 = arith.constant 0 : i32
    %c0_i32_0 = arith.constant 0 : i32
    return %arg0, %c0_i32 : i32, i32
  }
  func.func @transform_1(%arg0: i32) -> (i32, i32) {
    %c0_i32 = arith.constant 0 : i32
    %c0_i32_0 = arith.constant 0 : i32
    %c0_i32_1 = arith.constant 0 : i32
    return %c0_i32, %c0_i32_0 : i32, i32
  }
  func.func @transform_2(%arg0: i32) -> (i32, i32) {
    %c0_i32 = arith.constant 0 : i32
    %c0_i32_0 = arith.constant 0 : i32
    %c0_i32_1 = arith.constant 0 : i32
    return %c0_i32, %c0_i32_0 : i32, i32
  }
  func.func @transform_3(%arg0: i32) -> (i32, i32) {
    %c0_i32 = arith.constant 0 : i32
    %c0_i32_0 = arith.constant 0 : i32
    %c0_i32_1 = arith.constant 0 : i32
    return %c0_i32, %c0_i32_0 : i32, i32
  }
  func.func @transform_4(%arg0: i32) -> (i32, i32) {
    %c0_i32 = arith.constant 0 : i32
    %c0_i32_0 = arith.constant 0 : i32
    return %arg0, %c0_i32 : i32, i32
  }
}

</mosaic_0001>

<llo_original>
// kernel: tpu_custom_call.1
$region0: #{tpu_custom_call.1}
  #allocation0 [shape = 'u32[]', space=smem, size = 0x4, offset = 0x4, fixed_abs, tag = 'smem constant byte address 0x4 - core index']
  #allocation1 [shape = 'u32[72,128]{1,0:T(1,128)}', space=vmem, size = 0x9000, scoped, tag = 'internal scratch']
  %s0 = inlined_call_operand.vmem [shape: f32[256,32], index: 0, kind: input, shape index: {}]
  %s1 = inlined_call_operand.vmem [shape: bf16[32,104], index: 1, kind: input, shape index: {}]
  %s2 = inlined_call_operand.vmem [shape: f32[1,96], index: 2, kind: input, shape index: {}]
  %s3 = inlined_call_operand.vmem [shape: bf16[8,64], index: 3, kind: input, shape index: {}]
  %s4 = inlined_call_operand.vmem [shape: bf16[256,96], index: 4, kind: output, shape index: {}]
  %s5 = sld [smem:[#allocation0]]
  $region49: #{tpu_custom_call.1} parent=0
    _
  %s7 = ssub.s32 1, %s5
  %s8 = scalar_select 0, %s7, %s5
  loop: start=0, step=1, limit=4
  $region2: #{tpu_custom_call.1} parent=0 // loop_pre_header
    _
  $region3: #{tpu_custom_call.1} parent=0 // loop_header
    %s10 = sphi 0, %s14
    %p11 = scmp.ge.s32.totalorder %s10, 4
    %s20 = sphi 0, %s22
    %s23 = sphi 0, %s20
    %s24 = sphi 0, %s23
    %s40 = sphi 0, %s24
    %s44 = sphi 0, %s44
    %s46 = sphi 0, %s44
    %s47 = sphi 0, %s46
    %s61 = sphi 0, %s47
    %s65 = sphi 0, %s65
    %s67 = sphi 0, %s65
    %s68 = sphi 0, %s67
    %s82 = sphi 0, %s68
    %s86 = sphi 0, %s86
    %s88 = sphi 0, %s86
    %s89 = sphi 0, %s88
    %s103 = sphi 0, %s89
    %s109 = sphi 0, %s111
    %s112 = sphi 0, %s109
    %s113 = sphi 0, %s112
    %s129 = sphi 0, %s113
  $region4: #{tpu_custom_call.1} parent=0 // loop_header_branch
    %13 = sbr.rel (%p11) target = $region8
  $region5: #{tpu_custom_call.1} parent=0 // loop_body
    %s15 = ssub.s32 %s10, 1
    %s16 = ssub.s32 %s10, 2
    %s17 = sadd.s32 %s10, 1
    %s18 = ssub.s32 %s10, %s17
    %p19 = scmp.eq.s32.totalorder %s18, 0
    %s21 = sadd.s32 %s20, 1
    %s22 = scalar_select %p19, %s20, %s21
    %p25 = pneg %p19
    %p26 = scmp.eq.s32.totalorder %s10, 1
    %p27 = por %p25, %p26
    %p28 = scmp.ne.s32.totalorder %s20, %s23
    %p29 = scmp.eq.s32.totalorder %s10, 0
    %p30 = por %p28, %p29
    %p31 = scmp.ne.s32.totalorder %s20, %s23
    %p32 = scmp.eq.s32.totalorder %s15, 1
    %p33 = por %p31, %p32
    %p34 = scmp.ne.s32.totalorder %s23, %s24
    %p35 = scmp.eq.s32.totalorder %s15, 0
    %p36 = por %p34, %p35
    %p37 = scmp.ne.s32.totalorder %s23, %s24
    %p38 = scmp.eq.s32.totalorder %s16, 1
    %p39 = por %p37, %p38
    %p41 = scmp.ne.s32.totalorder %s24, %s40
    %p42 = scmp.eq.s32.totalorder %s16, 0
    %p43 = por %p41, %p42
    %s45 = sadd.s32 %s44, 1
    %p48 = scmp.eq.s32.totalorder %s10, 1
    %p49 = scmp.ne.s32.totalorder %s44, %s46
    %p50 = scmp.eq.s32.totalorder %s10, 0
    %p51 = por %p49, %p50
    %p52 = scmp.ne.s32.totalorder %s44, %s46
    %p53 = scmp.eq.s32.totalorder %s15, 1
    %p54 = por %p52, %p53
    %p55 = scmp.ne.s32.totalorder %s46, %s47
    %p56 = scmp.eq.s32.totalorder %s15, 0
    %p57 = por %p55, %p56
    %p58 = scmp.ne.s32.totalorder %s46, %s47
    %p59 = scmp.eq.s32.totalorder %s16, 1
    %p60 = por %p58, %p59
    %p62 = scmp.ne.s32.totalorder %s47, %s61
    %p63 = scmp.eq.s32.totalorder %s16, 0
    %p64 = por %p62, %p63
    %s66 = sadd.s32 %s65, 1
    %p69 = scmp.eq.s32.totalorder %s10, 1
    %p70 = scmp.ne.s32.totalorder %s65, %s67
    %p71 = scmp.eq.s32.totalorder %s10, 0
    %p72 = por %p70, %p71
    %p73 = scmp.ne.s32.totalorder %s65, %s67
    %p74 = scmp.eq.s32.totalorder %s15, 1
    %p75 = por %p73, %p74
    %p76 = scmp.ne.s32.totalorder %s67, %s68
    %p77 = scmp.eq.s32.totalorder %s15, 0
    %p78 = por %p76, %p77
    %p79 = scmp.ne.s32.totalorder %s67, %s68
    %p80 = scmp.eq.s32.totalorder %s16, 1
    %p81 = por %p79, %p80
    %p83 = scmp.ne.s32.totalorder %s68, %s82
    %p84 = scmp.eq.s32.totalorder %s16, 0
    %p85 = por %p83, %p84
    %s87 = sadd.s32 %s86, 1
    %p90 = scmp.eq.s32.totalorder %s10, 1
    %p91 = scmp.ne.s32.totalorder %s86, %s88
    %p92 = scmp.eq.s32.totalorder %s10, 0
    %p93 = por %p91, %p92
    %p94 = scmp.ne.s32.totalorder %s86, %s88
    %p95 = scmp.eq.s32.totalorder %s15, 1
    %p96 = por %p94, %p95
    %p97 = scmp.ne.s32.totalorder %s88, %s89
    %p98 = scmp.eq.s32.totalorder %s15, 0
    %p99 = por %p97, %p98
    %p100 = scmp.ne.s32.totalorder %s88, %s89
    %p101 = scmp.eq.s32.totalorder %s16, 1
    %p102 = por %p100, %p101
    %p104 = scmp.ne.s32.totalorder %s89, %s103
    %p105 = scmp.eq.s32.totalorder %s16, 0
    %p106 = por %p104, %p105
    %s107 = ssub.s32 %s10, %s17
    %p108 = scmp.eq.s32.totalorder %s107, 0
    %s110 = sadd.s32 %s109, 1
    %s111 = scalar_select %p108, %s109, %s110
    %p114 = pneg %p108
    %p115 = scmp.eq.s32.totalorder %s10, 1
    %p116 = por %p114, %p115
    %p117 = scmp.ne.s32.totalorder %s109, %s112
    %p118 = scmp.eq.s32.totalorder %s10, 0
    %p119 = por %p117, %p118
    %p120 = scmp.ne.s32.totalorder %s109, %s112
    %p121 = scmp.eq.s32.totalorder %s15, 1
    %p122 = por %p120, %p121
    %p123 = scmp.ne.s32.totalorder %s112, %s113
    %p124 = scmp.eq.s32.totalorder %s15, 0
    %p125 = por %p123, %p124
    %p126 = scmp.ne.s32.totalorder %s112, %s113
    %p127 = scmp.eq.s32.totalorder %s16, 1
    %p128 = por %p126, %p127
    %p130 = scmp.ne.s32.totalorder %s113, %s129
    %p131 = scmp.eq.s32.totalorder %s16, 0
    %p132 = por %p130, %p131
    %p133 = scmp.le.s32.totalorder 1, %s10
    %p134 = scmp.lt.s32.totalorder %s10, 3
    %p135 = pnand %p133, %p134
    %p136 = pneg %p135
    // Predicated region
    $region9: #{tpu_custom_call.1} parent=5 // pred_check
      _
    $region10: #{tpu_custom_call.1} parent=5 // pred_check_branch
      %138 = sbr.rel (%p135) target = $region12
    $region11: #{tpu_custom_call.1} parent=5 // pred_region
      %s139 = ssub.s32 %s10, 1
      // Predicated region
      $region13: #{tpu_custom_call.1} parent=11 // pred_check
        %p140 = pneg %p57
      $region14: #{tpu_custom_call.1} parent=11 // pred_check_branch
        %142 = sbr.rel (%p140) target = $region16
      $region15: #{tpu_custom_call.1} parent=11 // pred_region
        _
      $region16: #{tpu_custom_call.1} parent=11 // pred_fallthru
        _
      // Predicated region
      $region17: #{tpu_custom_call.1} parent=11 // pred_check
        %p143 = pneg %p78
      $region18: #{tpu_custom_call.1} parent=11 // pred_check_branch
        %145 = sbr.rel (%p143) target = $region20
      $region19: #{tpu_custom_call.1} parent=11 // pred_region
        _
      $region20: #{tpu_custom_call.1} parent=11 // pred_fallthru
        _
      // Predicated region
      $region21: #{tpu_custom_call.1} parent=11 // pred_check
        %p146 = pneg %p99
      $region22: #{tpu_custom_call.1} parent=11 // pred_check_branch
        %148 = sbr.rel (%p146) target = $region24
      $region23: #{tpu_custom_call.1} parent=11 // pred_region
        _
      $region24: #{tpu_custom_call.1} parent=11 // pred_fallthru
        _
    $region12: #{tpu_custom_call.1} parent=5 // pred_fallthru
      _
    %p149 = scmp.lt.s32.totalorder %s10, 2
    // Predicated region
    $region25: #{tpu_custom_call.1} parent=5 // pred_check
      %p150 = pneg %p149
    $region26: #{tpu_custom_call.1} parent=5 // pred_check_branch
      %152 = sbr.rel (%p150) target = $region28
    $region27: #{tpu_custom_call.1} parent=5 // pred_region
      // Predicated region
      $region29: #{tpu_custom_call.1} parent=27 // pred_check
        %p153 = pneg %p30
      $region30: #{tpu_custom_call.1} parent=27 // pred_check_branch
        %155 = sbr.rel (%p153) target = $region32
      $region31: #{tpu_custom_call.1} parent=27 // pred_region
        %s156 = smul.u32 16, %s10
        %p157 = scmp.lt.s32.totalorder %s156, 31
        %s158 = scalar_select %p157, %s156, 31
        %s159 = smul.addr %s158, 8
        %s160 = scalar_lea.vmem %s0, %s159
        %s161 = smul.u32 16, %s10
      $region32: #{tpu_custom_call.1} parent=27 // pred_fallthru
        _
    $region28: #{tpu_custom_call.1} parent=5 // pred_fallthru
      _
    %p162 = scmp.le.s32.totalorder 1, %s10
    %p163 = scmp.lt.s32.totalorder %s10, 3
    %p164 = pnand %p162, %p163
    %p165 = pneg %p164
    // Predicated region
    $region33: #{tpu_custom_call.1} parent=5 // pred_check
      _
    $region34: #{tpu_custom_call.1} parent=5 // pred_check_branch
      %167 = sbr.rel (%p164) target = $region36
    $region35: #{tpu_custom_call.1} parent=5 // pred_region
      %s168 = ssub.s32 %s10, 1
      %s169 = smul.u32 16, %s15
      %p170 = scmp.lt.s32.totalorder %s169, 31
      %s171 = scalar_select %p170, %s169, 31
      %s172 = smul.addr %s171, 8
      %s173 = scalar_lea.vmem %s0, %s172
      %p174 = pneg %p36
      %p175 = pneg %p33
      %p176 = pneg %p57
      %p177 = pneg %p54
      %p178 = pneg %p78
      %p179 = pneg %p75
      %p180 = pneg %p99
      %p181 = pneg %p96
      %p182 = pneg %p125
      %p183 = pneg %p122
      %s184 = smul.u32 16, %s15
      %p185 = scmp.lt.s32.totalorder %s184, 31
      %s186 = scalar_select %p185, %s184, 31
      %s187 = smul.addr %s186, 4
      %s188 = scalar_lea.vmem %s4, %s187
      %s189 = smul.u32 16, %s15
      %p190 = scmp.lt.s32.totalorder %s189, 31
      %s191 = scalar_select %p190, %s189, 31
      %s192 = smul.addr %s191, 8
      %s193 = scalar_lea.vmem %s0, %s192
      %s194 = smul.u32 16, %s15
      %s195 = smul.u32 16, %s15
      %p196 = scmp.lt.s32.totalorder %s195, 31
      %s197 = scalar_select %p196, %s195, 31
      %s198 = smul.addr %s197, 4
      %s199 = scalar_lea.vmem %s4, %s198
      %s200 = smul.u32 16, %s15
      %v202 = vld [vmem:[%s193] sm:$0xff]
      %v203 = vld [vmem:[%s193 + $0x8] sm:$0xff]
      %v204 = vld [vmem:[%s193 + $0x10] sm:$0xff]
      %v205 = vld [vmem:[%s193 + $0x18] sm:$0xff]
      %v206 = vld [vmem:[%s193 + $0x20] sm:$0xff]
      %v207 = vld [vmem:[%s193 + $0x28] sm:$0xff]
      %v208 = vld [vmem:[%s193 + $0x30] sm:$0xff]
      %v209 = vld [vmem:[%s193 + $0x38] sm:$0xff]
      %v210 = vld [vmem:[%s193 + $0x40] sm:$0xff]
      %v211 = vld [vmem:[%s193 + $0x48] sm:$0xff]
      %v212 = vld [vmem:[%s193 + $0x50] sm:$0xff]
      %v213 = vld [vmem:[%s193 + $0x58] sm:$0xff]
      %v214 = vld [vmem:[%s193 + $0x60] sm:$0xff]
      %v215 = vld [vmem:[%s193 + $0x68] sm:$0xff]
      %v216 = vld [vmem:[%s193 + $0x70] sm:$0xff]
      %v217 = vld [vmem:[%s193 + $0x78] sm:$0xff]
      %v218 = vpack.c.bf16 %v203, %v202
      %v219 = vpack.c.bf16 %v205, %v204
      %v220 = vpack.c.bf16 %v207, %v206
      %v221 = vpack.c.bf16 %v209, %v208
      %v222 = vpack.c.bf16 %v211, %v210
      %v223 = vpack.c.bf16 %v213, %v212
      %v224 = vpack.c.bf16 %v215, %v214
      %v225 = vpack.c.bf16 %v217, %v216
      %v226 = vld [vmem:[%s1] sm:$0xf]
      %v227 = vld [vmem:[%s1 + $0x4] sm:$0xf]
      %v228 = vld [vmem:[%s1 + $0x8] sm:$0xf]
      %v229 = vld [vmem:[%s1 + $0xc] sm:$0xf]
      %v234 = vunpack.c.l.b16 %v226
      %v235 = vunpack.c.l.b16 %v227
      %v236 = vunpack.c.l.b16 %v228
      %v237 = vunpack.c.l.b16 %v229
      %v238 = vpack.c.b16 %v235, %v234
      %v239 = vpack.c.b16 %v237, %v236
      %vm242 = vcmask 261120
      %v244 = vsel %vm242, %v218, 0
      %v247 = vsel %vm242, %v219, 0
      %v250 = vsel %vm242, %v220, 0
      %v253 = vsel %vm242, %v221, 0
      %v256 = vsel %vm242, %v222, 0
      %v259 = vsel %vm242, %v223, 0
      %v262 = vsel %vm242, %v224, 0
      %v265 = vsel %vm242, %v225, 0
      %267 = vmatpush.bf16.msra.mxu0 0
      %268 = vmatpush.bf16.msra.mxu0 0
      %269 = vmatpush.bf16.msra.mxu0 0
      %270 = vmatpush.bf16.msra.mxu0 0
      %271 = vmatpush.bf16.msra.mxu0 0
      %272 = vmatpush.bf16.msra.mxu0 0
      %273 = vmatpush.bf16.msra.mxu0 %v239
      %274 = vmatpush.bf16.msra.mxu0 %v238
      %275 = vmatmul.bf16.gmra.mxu0 %v244
      %v276 = vpop.f32.mrf.mxu0
      %v277 = vadd.f32 0.0, %v276
      %v278 = vpop.f32.mrf.mxu0
      %v279 = vadd.f32 0.0, %v278
      %280 = vmatmul.bf16.gmra.mxu0 %v247
      %v281 = vpop.f32.mrf.mxu0
      %v282 = vadd.f32 0.0, %v281
      %v283 = vpop.f32.mrf.mxu0
      %v284 = vadd.f32 0.0, %v283
      %285 = vmatmul.bf16.gmra.mxu0 %v250
      %v286 = vpop.f32.mrf.mxu0
      %v287 = vadd.f32 0.0, %v286
      %v288 = vpop.f32.mrf.mxu0
      %v289 = vadd.f32 0.0, %v288
      %290 = vmatmul.bf16.gmra.mxu0 %v253
      %v291 = vpop.f32.mrf.mxu0
      %v292 = vadd.f32 0.0, %v291
      %v293 = vpop.f32.mrf.mxu0
      %v294 = vadd.f32 0.0, %v293
      %295 = vmatmul.bf16.gmra.mxu0 %v256
      %v296 = vpop.f32.mrf.mxu0
      %v297 = vadd.f32 0.0, %v296
      %v298 = vpop.f32.mrf.mxu0
      %v299 = vadd.f32 0.0, %v298
      %300 = vmatmul.bf16.gmra.mxu0 %v259
      %v301 = vpop.f32.mrf.mxu0
      %v302 = vadd.f32 0.0, %v301
      %v303 = vpop.f32.mrf.mxu0
      %v304 = vadd.f32 0.0, %v303
      %305 = vmatmul.bf16.gmra.mxu0 %v262
      %v306 = vpop.f32.mrf.mxu0
      %v307 = vadd.f32 0.0, %v306
      %v308 = vpop.f32.mrf.mxu0
      %v309 = vadd.f32 0.0, %v308
      %310 = vmatmul.bf16.gmra.mxu0 %v265
      %v311 = vpop.f32.mrf.mxu0
      %v312 = vadd.f32 0.0, %v311
      %v313 = vpop.f32.mrf.mxu0
      %v314 = vadd.f32 0.0, %v313
      %315 = vdwg.mxu0
      %v316 = vpack.c.bf16 %v279, %v277
      %v317 = vpack.c.bf16 %v284, %v282
      %v318 = vpack.c.bf16 %v289, %v287
      %v319 = vpack.c.bf16 %v294, %v292
      %v320 = vpack.c.bf16 %v299, %v297
      %v321 = vpack.c.bf16 %v304, %v302
      %v322 = vpack.c.bf16 %v309, %v307
      %v323 = vpack.c.bf16 %v314, %v312
      %v324 = vld [vmem:[%s3] sm:$0xf]
      %333 = vrot.lane.b32.xlu0 %v316, 32
      %v334 = vpop.permute.xlu0 %333
      %335 = vrot.lane.b32.xlu0 %v317, 32
      %v336 = vpop.permute.xlu0 %335
      %337 = vrot.lane.b32.xlu0 %v318, 32
      %v338 = vpop.permute.xlu0 %337
      %339 = vrot.lane.b32.xlu0 %v319, 32
      %v340 = vpop.permute.xlu0 %339
      %341 = vrot.lane.b32.xlu0 %v320, 32
      %v342 = vpop.permute.xlu0 %341
      %343 = vrot.lane.b32.xlu0 %v321, 32
      %v344 = vpop.permute.xlu0 %343
      %345 = vrot.lane.b32.xlu0 %v322, 32
      %v346 = vpop.permute.xlu0 %345
      %347 = vrot.lane.b32.xlu0 %v323, 32
      %v348 = vpop.permute.xlu0 %347
      %vm349 = vcmask 64512
      %v351 = vsel %vm349, %v334, 0
      %v354 = vsel %vm349, %v336, 0
      %v357 = vsel %vm349, %v338, 0
      %v360 = vsel %vm349, %v340, 0
      %v363 = vsel %vm349, %v342, 0
      %v366 = vsel %vm349, %v344, 0
      %v369 = vsel %vm349, %v346, 0
      %v372 = vsel %vm349, %v348, 0
      %vm374 = vcmask 1043456
      %v376 = vsel %vm374, %v324, 0
      %378 = vmatpush.bf16.msra.mxu0 0
      %379 = vmatpush.bf16.msra.mxu0 0
      %380 = vmatpush.bf16.msra.mxu0 0
      %381 = vmatpush.bf16.msra.mxu0 0
      %382 = vmatpush.bf16.msra.mxu0 0
      %383 = vmatpush.bf16.msra.mxu0 0
      %384 = vmatpush.bf16.msra.mxu0 0
      %385 = vmatpush.bf16.msra.mxu0 %v376
      %386 = vmatmul.bf16.gmra.mxu0 %v351
      %v387 = vpop.f32.mrf.mxu0
      %v388 = vadd.f32 0.0, %v387
      %v389 = vpop.f32.mrf.mxu0
      %v390 = vadd.f32 0.0, %v389
      %391 = vmatmul.bf16.gmra.mxu0 %v354
      %v392 = vpop.f32.mrf.mxu0
      %v393 = vadd.f32 0.0, %v392
      %v394 = vpop.f32.mrf.mxu0
      %v395 = vadd.f32 0.0, %v394
      %396 = vmatmul.bf16.gmra.mxu0 %v357
      %v397 = vpop.f32.mrf.mxu0
      %v398 = vadd.f32 0.0, %v397
      %v399 = vpop.f32.mrf.mxu0
      %v400 = vadd.f32 0.0, %v399
      %401 = vmatmul.bf16.gmra.mxu0 %v360
      %v402 = vpop.f32.mrf.mxu0
      %v403 = vadd.f32 0.0, %v402
      %v404 = vpop.f32.mrf.mxu0
      %v405 = vadd.f32 0.0, %v404
      %406 = vmatmul.bf16.gmra.mxu0 %v363
      %v407 = vpop.f32.mrf.mxu0
      %v408 = vadd.f32 0.0, %v407
      %v409 = vpop.f32.mrf.mxu0
      %v410 = vadd.f32 0.0, %v409
      %411 = vmatmul.bf16.gmra.mxu0 %v366
      %v412 = vpop.f32.mrf.mxu0
      %v413 = vadd.f32 0.0, %v412
      %v414 = vpop.f32.mrf.mxu0
      %v415 = vadd.f32 0.0, %v414
      %416 = vmatmul.bf16.gmra.mxu0 %v369
      %v417 = vpop.f32.mrf.mxu0
      %v418 = vadd.f32 0.0, %v417
      %v419 = vpop.f32.mrf.mxu0
      %v420 = vadd.f32 0.0, %v419
      %421 = vmatmul.bf16.gmra.mxu0 %v372
      %v422 = vpop.f32.mrf.mxu0
      %v423 = vadd.f32 0.0, %v422
      %v424 = vpop.f32.mrf.mxu0
      %v425 = vadd.f32 0.0, %v424
      %426 = vdwg.mxu0
      %v427 = vld [vmem:[%s2] sm:$0x1]
      %v429 = vperm.slane %v427, 0
      %v431 = vadd.f32 %v277, %v429
      %v432 = vadd.f32 %v279, %v429
      %v433 = vadd.f32 %v282, %v429
      %v434 = vadd.f32 %v284, %v429
      %v435 = vadd.f32 %v287, %v429
      %v436 = vadd.f32 %v289, %v429
      %v437 = vadd.f32 %v292, %v429
      %v438 = vadd.f32 %v294, %v429
      %v439 = vadd.f32 %v297, %v429
      %v440 = vadd.f32 %v299, %v429
      %v441 = vadd.f32 %v302, %v429
      %v442 = vadd.f32 %v304, %v429
      %v443 = vadd.f32 %v307, %v429
      %v444 = vadd.f32 %v309, %v429
      %v445 = vadd.f32 %v312, %v429
      %v446 = vadd.f32 %v314, %v429
      %v447 = vadd.f32 %v431, %v388
      %v448 = vadd.f32 %v432, %v390
      %v449 = vadd.f32 %v433, %v393
      %v450 = vadd.f32 %v434, %v395
      %v451 = vadd.f32 %v435, %v398
      %v452 = vadd.f32 %v436, %v400
      %v453 = vadd.f32 %v437, %v403
      %v454 = vadd.f32 %v438, %v405
      %v455 = vadd.f32 %v439, %v408
      %v456 = vadd.f32 %v440, %v410
      %v457 = vadd.f32 %v441, %v413
      %v458 = vadd.f32 %v442, %v415
      %v459 = vadd.f32 %v443, %v418
      %v460 = vadd.f32 %v444, %v420
      %v461 = vadd.f32 %v445, %v423
      %v462 = vadd.f32 %v446, %v425
      %v463 = vpack.c.bf16 %v447, %v447
      %v464 = vpack.c.bf16 %v448, %v448
      %v465 = vpack.c.bf16 %v449, %v449
      %v466 = vpack.c.bf16 %v450, %v450
      %v467 = vpack.c.bf16 %v451, %v451
      %v468 = vpack.c.bf16 %v452, %v452
      %v469 = vpack.c.bf16 %v453, %v453
      %v470 = vpack.c.bf16 %v454, %v454
      %v471 = vpack.c.bf16 %v455, %v455
      %v472 = vpack.c.bf16 %v456, %v456
      %v473 = vpack.c.bf16 %v457, %v457
      %v474 = vpack.c.bf16 %v458, %v458
      %v475 = vpack.c.bf16 %v459, %v459
      %v476 = vpack.c.bf16 %v460, %v460
      %v477 = vpack.c.bf16 %v461, %v461
      %v478 = vpack.c.bf16 %v462, %v462
      %vm479 = vcmask 257024
      %480 = vst.msk [vmem:[%s199] sm:$0xf] %vm479, %v463
      %481 = vst.msk [vmem:[%s199 + $0x4] sm:$0xf] %vm479, %v464
      %482 = vst.msk [vmem:[%s199 + $0x8] sm:$0xf] %vm479, %v465
      %483 = vst.msk [vmem:[%s199 + $0xc] sm:$0xf] %vm479, %v466
      %484 = vst.msk [vmem:[%s199 + $0x10] sm:$0xf] %vm479, %v467
      %485 = vst.msk [vmem:[%s199 + $0x14] sm:$0xf] %vm479, %v468
      %486 = vst.msk [vmem:[%s199 + $0x18] sm:$0xf] %vm479, %v469
      %487 = vst.msk [vmem:[%s199 + $0x1c] sm:$0xf] %vm479, %v470
      %488 = vst.msk [vmem:[%s199 + $0x20] sm:$0xf] %vm479, %v471
      %489 = vst.msk [vmem:[%s199 + $0x24] sm:$0xf] %vm479, %v472
      %490 = vst.msk [vmem:[%s199 + $0x28] sm:$0xf] %vm479, %v473
      %491 = vst.msk [vmem:[%s199 + $0x2c] sm:$0xf] %vm479, %v474
      %492 = vst.msk [vmem:[%s199 + $0x30] sm:$0xf] %vm479, %v475
      %493 = vst.msk [vmem:[%s199 + $0x34] sm:$0xf] %vm479, %v476
      %494 = vst.msk [vmem:[%s199 + $0x38] sm:$0xf] %vm479, %v477
      %495 = vst.msk [vmem:[%s199 + $0x3c] sm:$0xf] %vm479, %v478
      %v496 = vpack.c.bf16 %v431, %v431
      %v497 = vpack.c.bf16 %v432, %v432
      %v498 = vpack.c.bf16 %v433, %v433
      %v499 = vpack.c.bf16 %v434, %v434
      %v500 = vpack.c.bf16 %v435, %v435
      %v501 = vpack.c.bf16 %v436, %v436
      %v502 = vpack.c.bf16 %v437, %v437
      %v503 = vpack.c.bf16 %v438, %v438
      %v504 = vpack.c.bf16 %v439, %v439
      %v505 = vpack.c.bf16 %v440, %v440
      %v506 = vpack.c.bf16 %v441, %v441
      %v507 = vpack.c.bf16 %v442, %v442
      %v508 = vpack.c.bf16 %v443, %v443
      %v509 = vpack.c.bf16 %v444, %v444
      %v510 = vpack.c.bf16 %v445, %v445
      %v511 = vpack.c.bf16 %v446, %v446
      %vm512 = vcmask 519424
      %513 = vst.msk [vmem:[%s199] sm:$0xf] %vm512, %v496
      %514 = vst.msk [vmem:[%s199 + $0x4] sm:$0xf] %vm512, %v497
      %515 = vst.msk [vmem:[%s199 + $0x8] sm:$0xf] %vm512, %v498
      %516 = vst.msk [vmem:[%s199 + $0xc] sm:$0xf] %vm512, %v499
      %517 = vst.msk [vmem:[%s199 + $0x10] sm:$0xf] %vm512, %v500
      %518 = vst.msk [vmem:[%s199 + $0x14] sm:$0xf] %vm512, %v501
      %519 = vst.msk [vmem:[%s199 + $0x18] sm:$0xf] %vm512, %v502
      %520 = vst.msk [vmem:[%s199 + $0x1c] sm:$0xf] %vm512, %v503
      %521 = vst.msk [vmem:[%s199 + $0x20] sm:$0xf] %vm512, %v504
      %522 = vst.msk [vmem:[%s199 + $0x24] sm:$0xf] %vm512, %v505
      %523 = vst.msk [vmem:[%s199 + $0x28] sm:$0xf] %vm512, %v506
      %524 = vst.msk [vmem:[%s199 + $0x2c] sm:$0xf] %vm512, %v507
      %525 = vst.msk [vmem:[%s199 + $0x30] sm:$0xf] %vm512, %v508
      %526 = vst.msk [vmem:[%s199 + $0x34] sm:$0xf] %vm512, %v509
      %527 = vst.msk [vmem:[%s199 + $0x38] sm:$0xf] %vm512, %v510
      %528 = vst.msk [vmem:[%s199 + $0x3c] sm:$0xf] %vm512, %v511
      %545 = vrot.lane.b32.xlu0 %v388, 32
      %v546 = vpop.permute.xlu0 %545
      %547 = vrot.lane.b32.xlu0 %v390, 32
      %v548 = vpop.permute.xlu0 %547
      %549 = vrot.lane.b32.xlu0 %v393, 32
      %v550 = vpop.permute.xlu0 %549
      %551 = vrot.lane.b32.xlu0 %v395, 32
      %v552 = vpop.permute.xlu0 %551
      %553 = vrot.lane.b32.xlu0 %v398, 32
      %v554 = vpop.permute.xlu0 %553
      %555 = vrot.lane.b32.xlu0 %v400, 32
      %v556 = vpop.permute.xlu0 %555
      %557 = vrot.lane.b32.xlu0 %v403, 32
      %v558 = vpop.permute.xlu0 %557
      %559 = vrot.lane.b32.xlu0 %v405, 32
      %v560 = vpop.permute.xlu0 %559
      %561 = vrot.lane.b32.xlu0 %v408, 32
      %v562 = vpop.permute.xlu0 %561
      %563 = vrot.lane.b32.xlu0 %v410, 32
      %v564 = vpop.permute.xlu0 %563
      %565 = vrot.lane.b32.xlu0 %v413, 32
      %v566 = vpop.permute.xlu0 %565
      %567 = vrot.lane.b32.xlu0 %v415, 32
      %v568 = vpop.permute.xlu0 %567
      %569 = vrot.lane.b32.xlu0 %v418, 32
      %v570 = vpop.permute.xlu0 %569
      %571 = vrot.lane.b32.xlu0 %v420, 32
      %v572 = vpop.permute.xlu0 %571
      %573 = vrot.lane.b32.xlu0 %v423, 32
      %v574 = vpop.permute.xlu0 %573
      %575 = vrot.lane.b32.xlu0 %v425, 32
      %v576 = vpop.permute.xlu0 %575
      %v593 = vadd.f32 %v431, %v546
      %v594 = vadd.f32 %v432, %v548
      %v595 = vadd.f32 %v433, %v550
      %v596 = vadd.f32 %v434, %v552
      %v597 = vadd.f32 %v435, %v554
      %v598 = vadd.f32 %v436, %v556
      %v599 = vadd.f32 %v437, %v558
      %v600 = vadd.f32 %v438, %v560
      %v601 = vadd.f32 %v439, %v562
      %v602 = vadd.f32 %v440, %v564
      %v603 = vadd.f32 %v441, %v566
      %v604 = vadd.f32 %v442, %v568
      %v605 = vadd.f32 %v443, %v570
      %v606 = vadd.f32 %v444, %v572
      %v607 = vadd.f32 %v445, %v574
      %v608 = vadd.f32 %v446, %v576
      %v609 = vpack.c.bf16 %v593, %v593
      %v610 = vpack.c.bf16 %v594, %v594
      %v611 = vpack.c.bf16 %v595, %v595
      %v612 = vpack.c.bf16 %v596, %v596
      %v613 = vpack.c.bf16 %v597, %v597
      %v614 = vpack.c.bf16 %v598, %v598
      %v615 = vpack.c.bf16 %v599, %v599
      %v616 = vpack.c.bf16 %v600, %v600
      %v617 = vpack.c.bf16 %v601, %v601
      %v618 = vpack.c.bf16 %v602, %v602
      %v619 = vpack.c.bf16 %v603, %v603
      %v620 = vpack.c.bf16 %v604, %v604
      %v621 = vpack.c.bf16 %v605, %v605
      %v622 = vpack.c.bf16 %v606, %v606
      %v623 = vpack.c.bf16 %v607, %v607
      %v624 = vpack.c.bf16 %v608, %v608
      %vm625 = vcmask 781824
      %626 = vst.msk [vmem:[%s199] sm:$0xf] %vm625, %v609
      %627 = vst.msk [vmem:[%s199 + $0x4] sm:$0xf] %vm625, %v610
      %628 = vst.msk [vmem:[%s199 + $0x8] sm:$0xf] %vm625, %v611
      %629 = vst.msk [vmem:[%s199 + $0xc] sm:$0xf] %vm625, %v612
      %630 = vst.msk [vmem:[%s199 + $0x10] sm:$0xf] %vm625, %v613
      %631 = vst.msk [vmem:[%s199 + $0x14] sm:$0xf] %vm625, %v614
      %632 = vst.msk [vmem:[%s199 + $0x18] sm:$0xf] %vm625, %v615
      %633 = vst.msk [vmem:[%s199 + $0x1c] sm:$0xf] %vm625, %v616
      %634 = vst.msk [vmem:[%s199 + $0x20] sm:$0xf] %vm625, %v617
      %635 = vst.msk [vmem:[%s199 + $0x24] sm:$0xf] %vm625, %v618
      %636 = vst.msk [vmem:[%s199 + $0x28] sm:$0xf] %vm625, %v619
      %637 = vst.msk [vmem:[%s199 + $0x2c] sm:$0xf] %vm625, %v620
      %638 = vst.msk [vmem:[%s199 + $0x30] sm:$0xf] %vm625, %v621
      %639 = vst.msk [vmem:[%s199 + $0x34] sm:$0xf] %vm625, %v622
      %640 = vst.msk [vmem:[%s199 + $0x38] sm:$0xf] %vm625, %v623
      %641 = vst.msk [vmem:[%s199 + $0x3c] sm:$0xf] %vm625, %v624
      %s642 = smul.u32 16, %s15
      %p643 = scmp.lt.s32.totalorder %s642, 31
      %s644 = scalar_select %p643, %s642, 31
      %s645 = smul.addr %s644, 4
      %s646 = scalar_lea.vmem %s4, %s645
      // Predicated region
      $region37: #{tpu_custom_call.1} parent=35 // pred_check
        %p647 = pneg %p122
      $region38: #{tpu_custom_call.1} parent=35 // pred_check_branch
        %649 = sbr.rel (%p647) target = $region40
      $region39: #{tpu_custom_call.1} parent=35 // pred_region
        %s650 = smul.u32 16, %s15
      $region40: #{tpu_custom_call.1} parent=35 // pred_fallthru
        _
    $region36: #{tpu_custom_call.1} parent=5 // pred_fallthru
      _
    %p651 = scmp.le.s32.totalorder 2, %s10
    // Predicated region
    $region41: #{tpu_custom_call.1} parent=5 // pred_check
      %p652 = pneg %p651
    $region42: #{tpu_custom_call.1} parent=5 // pred_check_branch
      %654 = sbr.rel (%p652) target = $region44
    $region43: #{tpu_custom_call.1} parent=5 // pred_region
      %s655 = ssub.s32 %s10, 2
      // Predicated region
      $region45: #{tpu_custom_call.1} parent=43 // pred_check
        %p656 = pneg %p128
      $region46: #{tpu_custom_call.1} parent=43 // pred_check_branch
        %658 = sbr.rel (%p656) target = $region48
      $region47: #{tpu_custom_call.1} parent=43 // pred_region
        %s659 = smul.u32 16, %s16
        %p660 = scmp.lt.s32.totalorder %s659, 31
        %s661 = scalar_select %p660, %s659, 31
        %s662 = smul.addr %s661, 4
        %s663 = scalar_lea.vmem %s4, %s662
      $region48: #{tpu_custom_call.1} parent=43 // pred_fallthru
        _
    $region44: #{tpu_custom_call.1} parent=5 // pred_fallthru
      _
  $region6: #{tpu_custom_call.1} parent=0 // loop_footer
    %s14 = sadd.s32 1, %s10
  $region7: #{tpu_custom_call.1} parent=0 // loop_footer_branch
    %9 = sbr.rel target = $region3
  $region8: #{tpu_custom_call.1} parent=0 // loop_exit
    _

</llo_original>
